<compile_context>
chip_gen: v7x
topology: tpu7x:2x2x1
jax: 0.10.0
libtpu: 0.0.40
codegen_flags: <defaults>
</compile_context>

<pallas_src>
import jax
import jax.numpy as jnp
from jax.experimental import pallas as pl
from jax.experimental.pallas import tpu as pltpu

K = 15       # Conv1d kernel_size
PAD = 7      # Conv1d padding
LPAD = 8     # internal left zero-pad (7 rounded up to the f32 sublane tile)
RPAD = 8     # internal right zero-pad (only 7 rows are ever read)
EPS = 1e-5   # BatchNorm1d default eps


def _conv(src_pad, w2d, L):
    """Stride-1 1D conv of a zero-padded NLC source against w2d = (K*Cin, Cout).

    src_pad: (N, L + LPAD + RPAD, Cin); output position l reads padded rows
    l+1 .. l+15 (left pad is 8 = 7 + 1 alignment row).  Returns (N, L, Cout) f32.
    """
    N, _, Cin = src_pad.shape
    Cout = w2d.shape[1]
    if Cin >= 128:
        # Production path: cast the source to bf16 ONCE, then K accumulating
        # per-tap matmuls (contraction Cin >= 128 fills the MXU) into an f32
        # accumulator.  No K*Cin im2col slab and no per-tap casts.
        src_bf = src_pad.astype(jnp.bfloat16)
        w_bf = w2d.astype(jnp.bfloat16)
        acc = jnp.zeros((N, L, Cout), jnp.float32)
        for k in range(K):
            acc = acc + jax.lax.dot_general(
                src_bf[:, 1 + k:1 + k + L, :],
                w_bf[k * Cin:(k + 1) * Cin, :],
                (((2,), (0,)), ((), ())),
                preferred_element_type=jnp.float32)
        return acc
    # Tiny-Cin path (demo, C=4): single im2col dot with contraction K*Cin.
    # The slab is KB-scale here; f32 operands keep PyTorch's conv numerics and
    # avoid packed-dtype relayouts at the 15 unaligned sublane tap offsets.
    cols = jnp.concatenate(
        [src_pad[:, 1 + k:1 + k + L, :] for k in range(K)], axis=-1)
    return jax.lax.dot_general(
        cols, w2d.astype(cols.dtype), (((2,), (0,)), ((), ())),
        preferred_element_type=jnp.float32)


def _bn_scale_shift(y, gamma, beta):
    """Training-mode BatchNorm1d folded to per-channel scale/shift (f32).

    One pass: sum + sum-of-squares over (N, L), biased variance clamped at 0
    before rsqrt (E[x^2]-E[x]^2 can cancel slightly negative)."""
    cnt = y.shape[0] * y.shape[1]
    s = jnp.sum(y, axis=(0, 1), keepdims=True)
    ss = jnp.sum(y * y, axis=(0, 1), keepdims=True)
    mean = s * (1.0 / cnt)
    var = jnp.maximum(ss * (1.0 / cnt) - mean * mean, 0.0)
    scale = gamma * jax.lax.rsqrt(var + EPS)
    shift = beta - mean * scale
    return scale, shift


def basic_block_kernel(x_ref, w1_ref, g1_ref, b1_ref, w2_ref, g2_ref, b2_ref,
                       out_ref):
    N, L, Cin = x_ref.shape
    Cout = w1_ref.shape[1]

    x = x_ref[...]                                    # (N, L, Cin) f32; residual
    zx = jnp.zeros((N, LPAD, Cin), x.dtype)
    x_pad = jnp.concatenate([zx, x, zx], axis=1)      # aligned 8-row zero strips

    # conv1 -> bn1 -> relu
    y1 = _conv(x_pad, w1_ref[...], L)                 # (N, L, Cout) f32
    scale1, shift1 = _bn_scale_shift(y1, g1_ref[...], b1_ref[...])
    h = jnp.maximum(y1 * scale1 + shift1, 0.0)

    # conv2 padding as a live value: no VMEM scratch store->reload round trip.
    zh = jnp.zeros((N, LPAD, Cout), h.dtype)
    h_pad = jnp.concatenate([zh, h, zh], axis=1)

    # conv2 -> bn2 -> +residual -> relu
    y2 = _conv(h_pad, w2_ref[...], L)
    scale2, shift2 = _bn_scale_shift(y2, g2_ref[...], b2_ref[...])
    out_ref[...] = jnp.maximum(y2 * scale2 + shift2 + x, 0.0)


def _vmem_capacity_bytes():
    """Physical VMEM per TensorCore (generation-aware; 64 MiB fallback = v7x)."""
    try:
        cap = getattr(pltpu.get_tpu_info(), "vmem_capacity_bytes", None)
        if cap:
            return int(cap)
    except Exception:
        pass
    return 64 * 1024 * 1024


def basic_block_forward(x_ncl, w1, gamma1, beta1, w2, gamma2, beta2):
    """x_ncl: (N, C, L) as in PyTorch; conv weights (Cout, Cin, K) as in Conv1d."""
    N, C, L = x_ncl.shape
    Cout = w1.shape[0]
    Lp = L + LPAD + RPAD

    # TODO(synk): accept/emit NLC at the module boundary (or fold the relayout
    # into a tiled grid's index_maps) to avoid these two extra HBM passes.
    x_nlc = jnp.transpose(x_ncl, (0, 2, 1)).astype(jnp.float32)

    # (Cout, Cin, K) -> (K*Cin, Cout); row index = k*Cin + ci matches the
    # im2col / per-tap slicing order.  Operand dtype per conv: bf16 only when
    # its contraction (Cin) is large enough to fill the MXU, else f32.
    def conv_weight(w, cin):
        dt = jnp.bfloat16 if cin >= 128 else jnp.float32
        return jnp.transpose(w, (2, 1, 0)).reshape(K * cin, w.shape[0]).astype(dt)

    w1_2d = conv_weight(w1, C)
    w2_2d = conv_weight(w2, Cout)
    g1 = gamma1.reshape(1, 1, Cout).astype(jnp.float32)
    b1 = beta1.reshape(1, 1, Cout).astype(jnp.float32)
    g2 = gamma2.reshape(1, 1, Cout).astype(jnp.float32)
    b2 = beta2.reshape(1, 1, Cout).astype(jnp.float32)

    # VMEM byte estimate for the single fused invocation (see header TODO for
    # the tiled multi-pass variant once this no longer fits).
    def conv_operand_bytes(cin):
        if cin >= 128:
            return 2 * N * Lp * cin            # one bf16 copy of the padded source
        return 4 * N * L * K * cin             # f32 im2col slab

    est = (4 * N * L * C + 4 * N * Lp * C      # input + padded copy (f32)
           + 4 * N * Lp * Cout                 # padded h (f32)
           + conv_operand_bytes(C) + conv_operand_bytes(Cout)
           + 4 * 4 * N * L * Cout              # y1 / h / y2 / out (f32)
           + 4 * K * (C + Cout) * Cout)        # weights
    cap = _vmem_capacity_bytes()
    vmem_limit = int(min(max(2 * est, 16 * 1024 * 1024), (7 * cap) // 8))

    vmem = pl.BlockSpec(memory_space=pltpu.MemorySpace.VMEM)
    out_nlc = pl.pallas_call(
        basic_block_kernel,
        out_shape=jax.ShapeDtypeStruct((N, L, Cout), jnp.float32),
        in_specs=[vmem] * 7,
        out_specs=vmem,
        compiler_params=pltpu.CompilerParams(vmem_limit_bytes=vmem_limit),
    )(x_nlc, w1_2d, g1, b1, w2_2d, g2, b2)

    return jnp.transpose(out_nlc, (0, 2, 1))   # back to (N, C, L)


def reference_forward(x, w1, g1, b1, w2, g2, b2):
    """Pure-JAX reference matching the PyTorch module (training-mode BN, f32)."""
    def conv(y, w):
        return jax.lax.conv_general_dilated(
            y, w, window_strides=(1,), padding=[(PAD, PAD)],
            dimension_numbers=("NCH", "OIH", "NCH"),
            precision=jax.lax.Precision.HIGHEST)

    def bn(y, g, b):
        mean = y.mean(axis=(0, 2), keepdims=True)
        var = ((y - mean) ** 2).mean(axis=(0, 2), keepdims=True)
        return (y - mean) / jnp.sqrt(var + EPS) * g[None, :, None] + b[None, :, None]

    out = jnp.maximum(bn(conv(x, w1), g1, b1), 0.0)
    out = bn(conv(out, w2), g2, b2)
    return jnp.maximum(out + x, 0.0)


if __name__ == "__main__":
    # BasicBlock(inplanes=4, planes=4, stride=1, downsample=None)
    N, C, L = 2, 4, 16
    inplanes = planes = C

    key = jax.random.PRNGKey(0)
    kx, k1, k2, kg1, kb1, kg2, kb2 = jax.random.split(key, 7)

    x = jax.random.normal(kx, (N, C, L), jnp.float32)
    w1 = jax.random.normal(k1, (planes, inplanes, K), jnp.float32) * 0.1
    w2 = jax.random.normal(k2, (planes, planes, K), jnp.float32) * 0.1
    gamma1 = 1.0 + 0.1 * jax.random.normal(kg1, (planes,), jnp.float32)
    beta1 = 0.1 * jax.random.normal(kb1, (planes,), jnp.float32)
    gamma2 = 1.0 + 0.1 * jax.random.normal(kg2, (planes,), jnp.float32)
    beta2 = 0.1 * jax.random.normal(kb2, (planes,), jnp.float32)

    out = basic_block_forward(x, w1, gamma1, beta1, w2, gamma2, beta2)
    out = jax.block_until_ready(out)
    assert out.shape == (N, C, L)

    # f32 PyTorch-semantics reference.  The tiny-C kernel path keeps f32 conv
    # operands, so the difference is set by the TPU matmul pass decomposition
    # (typically ~1e-5); 5e-2 is a robust guard that still catches indexing /
    # BN / residual bugs, which produce O(0.1+) errors on normalized outputs.
    ref = reference_forward(x, w1, gamma1, beta1, w2, gamma2, beta2)
    err = float(jnp.max(jnp.abs(out - ref)))
    assert err < 5e-2, f"reference mismatch: max abs err {err}"

    print("KERNEL_OK")
</pallas_src>

<mosaic_0001>
module attributes {stable_mosaic.version = 11 : i64} {
  func.func @basic_block_kernel(%arg0: memref<2x16x4xf32, #tpu.memory_space<vmem>>, %arg1: memref<60x4xf32, #tpu.memory_space<vmem>>, %arg2: memref<1x1x4xf32, #tpu.memory_space<vmem>>, %arg3: memref<1x1x4xf32, #tpu.memory_space<vmem>>, %arg4: memref<60x4xf32, #tpu.memory_space<vmem>>, %arg5: memref<1x1x4xf32, #tpu.memory_space<vmem>>, %arg6: memref<1x1x4xf32, #tpu.memory_space<vmem>>, %arg7: memref<2x16x4xf32, #tpu.memory_space<vmem>>) attributes {dimension_semantics = [], scalar_prefetch = 0 : i64, scratch_operands = 0 : i64, tpu.core_type = #tpu.core_type<tc>} {
    %c0 = arith.constant 0 : index
    %c0_0 = arith.constant 0 : index
    %c0_1 = arith.constant 0 : index
    %0 = vector.load %arg0[%c0, %c0_0, %c0_1] : memref<2x16x4xf32, #tpu.memory_space<vmem>>, vector<2x16x4xf32>
    %cst = arith.constant 0.000000e+00 : f32
    %1 = vector.broadcast %cst : f32 to vector<2x8x4xf32>
    %2 = tpu.concatenate %1, %0, %1 in 1 : vector<2x8x4xf32>, vector<2x16x4xf32>, vector<2x8x4xf32> -> vector<2x32x4xf32>
    %c0_2 = arith.constant 0 : index
    %c0_3 = arith.constant 0 : index
    %3 = vector.load %arg1[%c0_2, %c0_3] : memref<60x4xf32, #tpu.memory_space<vmem>>, vector<60x4xf32>
    %4 = vector.extract_strided_slice %2 {offsets = [0, 1, 0], sizes = [2, 16, 4], strides = [1, 1, 1]} : vector<2x32x4xf32> to vector<2x16x4xf32>
    %5 = vector.extract_strided_slice %2 {offsets = [0, 2, 0], sizes = [2, 16, 4], strides = [1, 1, 1]} : vector<2x32x4xf32> to vector<2x16x4xf32>
    %6 = vector.extract_strided_slice %2 {offsets = [0, 3, 0], sizes = [2, 16, 4], strides = [1, 1, 1]} : vector<2x32x4xf32> to vector<2x16x4xf32>
    %7 = vector.extract_strided_slice %2 {offsets = [0, 4, 0], sizes = [2, 16, 4], strides = [1, 1, 1]} : vector<2x32x4xf32> to vector<2x16x4xf32>
    %8 = vector.extract_strided_slice %2 {offsets = [0, 5, 0], sizes = [2, 16, 4], strides = [1, 1, 1]} : vector<2x32x4xf32> to vector<2x16x4xf32>
    %9 = vector.extract_strided_slice %2 {offsets = [0, 6, 0], sizes = [2, 16, 4], strides = [1, 1, 1]} : vector<2x32x4xf32> to vector<2x16x4xf32>
    %10 = vector.extract_strided_slice %2 {offsets = [0, 7, 0], sizes = [2, 16, 4], strides = [1, 1, 1]} : vector<2x32x4xf32> to vector<2x16x4xf32>
    %11 = vector.extract_strided_slice %2 {offsets = [0, 8, 0], sizes = [2, 16, 4], strides = [1, 1, 1]} : vector<2x32x4xf32> to vector<2x16x4xf32>
    %12 = vector.extract_strided_slice %2 {offsets = [0, 9, 0], sizes = [2, 16, 4], strides = [1, 1, 1]} : vector<2x32x4xf32> to vector<2x16x4xf32>
    %13 = vector.extract_strided_slice %2 {offsets = [0, 10, 0], sizes = [2, 16, 4], strides = [1, 1, 1]} : vector<2x32x4xf32> to vector<2x16x4xf32>
    %14 = vector.extract_strided_slice %2 {offsets = [0, 11, 0], sizes = [2, 16, 4], strides = [1, 1, 1]} : vector<2x32x4xf32> to vector<2x16x4xf32>
    %15 = vector.extract_strided_slice %2 {offsets = [0, 12, 0], sizes = [2, 16, 4], strides = [1, 1, 1]} : vector<2x32x4xf32> to vector<2x16x4xf32>
    %16 = vector.extract_strided_slice %2 {offsets = [0, 13, 0], sizes = [2, 16, 4], strides = [1, 1, 1]} : vector<2x32x4xf32> to vector<2x16x4xf32>
    %17 = vector.extract_strided_slice %2 {offsets = [0, 14, 0], sizes = [2, 16, 4], strides = [1, 1, 1]} : vector<2x32x4xf32> to vector<2x16x4xf32>
    %18 = vector.extract_strided_slice %2 {offsets = [0, 15, 0], sizes = [2, 16, 4], strides = [1, 1, 1]} : vector<2x32x4xf32> to vector<2x16x4xf32>
    %19 = tpu.concatenate %4, %5, %6, %7, %8, %9, %10, %11, %12, %13, %14, %15, %16, %17, %18 in 2 : vector<2x16x4xf32>, vector<2x16x4xf32>, vector<2x16x4xf32>, vector<2x16x4xf32>, vector<2x16x4xf32>, vector<2x16x4xf32>, vector<2x16x4xf32>, vector<2x16x4xf32>, vector<2x16x4xf32>, vector<2x16x4xf32>, vector<2x16x4xf32>, vector<2x16x4xf32>, vector<2x16x4xf32>, vector<2x16x4xf32>, vector<2x16x4xf32> -> vector<2x16x60xf32>
    %cst_4 = arith.constant dense<0.000000e+00> : vector<2x16x4xf32>
    %20 = tpu.matmul %19, %3, %cst_4 {dimension_numbers = #tpu.dot_dimension_numbers<[2], [0], [0, 1], [1], [0, 0, 0, 1, 1, 1], [], []>} : vector<2x16x60xf32>, vector<60x4xf32>, vector<2x16x4xf32> -> vector<2x16x4xf32>
    %c0_5 = arith.constant 0 : index
    %c0_6 = arith.constant 0 : index
    %c0_7 = arith.constant 0 : index
    %21 = vector.load %arg2[%c0_5, %c0_6, %c0_7] : memref<1x1x4xf32, #tpu.memory_space<vmem>>, vector<1x1x4xf32>
    %c0_8 = arith.constant 0 : index
    %c0_9 = arith.constant 0 : index
    %c0_10 = arith.constant 0 : index
    %22 = vector.load %arg3[%c0_8, %c0_9, %c0_10] : memref<1x1x4xf32, #tpu.memory_space<vmem>>, vector<1x1x4xf32>
    %cst_11 = arith.constant dense<0.000000e+00> : vector<4xf32>
    %23 = vector.multi_reduction <add>, %20, %cst_11 [0, 1] : vector<2x16x4xf32> to vector<4xf32>
    %24 = vector.shape_cast %23 : vector<4xf32> to vector<1x1x4xf32>
    %25 = arith.mulf %20, %20 : vector<2x16x4xf32>
    %cst_12 = arith.constant dense<0.000000e+00> : vector<4xf32>
    %26 = vector.multi_reduction <add>, %25, %cst_12 [0, 1] : vector<2x16x4xf32> to vector<4xf32>
    %27 = vector.shape_cast %26 : vector<4xf32> to vector<1x1x4xf32>
    %cst_13 = arith.constant 3.125000e-02 : f32
    %28 = vector.broadcast %cst_13 : f32 to vector<1x1x4xf32>
    %29 = arith.mulf %24, %28 : vector<1x1x4xf32>
    %cst_14 = arith.constant 3.125000e-02 : f32
    %30 = vector.broadcast %cst_14 : f32 to vector<1x1x4xf32>
    %31 = arith.mulf %27, %30 : vector<1x1x4xf32>
    %32 = arith.mulf %29, %29 : vector<1x1x4xf32>
    %33 = arith.subf %31, %32 : vector<1x1x4xf32>
    %cst_15 = arith.constant 0.000000e+00 : f32
    %34 = vector.broadcast %cst_15 : f32 to vector<1x1x4xf32>
    %35 = arith.maximumf %33, %34 : vector<1x1x4xf32>
    %cst_16 = arith.constant 9.99999974E-6 : f32
    %36 = vector.broadcast %cst_16 : f32 to vector<1x1x4xf32>
    %37 = arith.addf %35, %36 : vector<1x1x4xf32>
    %38 = math.rsqrt %37 : vector<1x1x4xf32>
    %39 = arith.mulf %21, %38 : vector<1x1x4xf32>
    %40 = arith.mulf %29, %39 : vector<1x1x4xf32>
    %41 = arith.subf %22, %40 : vector<1x1x4xf32>
    %42 = vector.broadcast %39 : vector<1x1x4xf32> to vector<2x16x4xf32>
    %43 = arith.mulf %20, %42 : vector<2x16x4xf32>
    %44 = vector.broadcast %41 : vector<1x1x4xf32> to vector<2x16x4xf32>
    %45 = arith.addf %43, %44 : vector<2x16x4xf32>
    %cst_17 = arith.constant 0.000000e+00 : f32
    %46 = vector.broadcast %cst_17 : f32 to vector<2x16x4xf32>
    %47 = arith.maximumf %45, %46 : vector<2x16x4xf32>
    %cst_18 = arith.constant 0.000000e+00 : f32
    %48 = vector.broadcast %cst_18 : f32 to vector<2x8x4xf32>
    %49 = tpu.concatenate %48, %47, %48 in 1 : vector<2x8x4xf32>, vector<2x16x4xf32>, vector<2x8x4xf32> -> vector<2x32x4xf32>
    %c0_19 = arith.constant 0 : index
    %c0_20 = arith.constant 0 : index
    %50 = vector.load %arg4[%c0_19, %c0_20] : memref<60x4xf32, #tpu.memory_space<vmem>>, vector<60x4xf32>
    %51 = vector.extract_strided_slice %49 {offsets = [0, 1, 0], sizes = [2, 16, 4], strides = [1, 1, 1]} : vector<2x32x4xf32> to vector<2x16x4xf32>
    %52 = vector.extract_strided_slice %49 {offsets = [0, 2, 0], sizes = [2, 16, 4], strides = [1, 1, 1]} : vector<2x32x4xf32> to vector<2x16x4xf32>
    %53 = vector.extract_strided_slice %49 {offsets = [0, 3, 0], sizes = [2, 16, 4], strides = [1, 1, 1]} : vector<2x32x4xf32> to vector<2x16x4xf32>
    %54 = vector.extract_strided_slice %49 {offsets = [0, 4, 0], sizes = [2, 16, 4], strides = [1, 1, 1]} : vector<2x32x4xf32> to vector<2x16x4xf32>
    %55 = vector.extract_strided_slice %49 {offsets = [0, 5, 0], sizes = [2, 16, 4], strides = [1, 1, 1]} : vector<2x32x4xf32> to vector<2x16x4xf32>
    %56 = vector.extract_strided_slice %49 {offsets = [0, 6, 0], sizes = [2, 16, 4], strides = [1, 1, 1]} : vector<2x32x4xf32> to vector<2x16x4xf32>
    %57 = vector.extract_strided_slice %49 {offsets = [0, 7, 0], sizes = [2, 16, 4], strides = [1, 1, 1]} : vector<2x32x4xf32> to vector<2x16x4xf32>
    %58 = vector.extract_strided_slice %49 {offsets = [0, 8, 0], sizes = [2, 16, 4], strides = [1, 1, 1]} : vector<2x32x4xf32> to vector<2x16x4xf32>
    %59 = vector.extract_strided_slice %49 {offsets = [0, 9, 0], sizes = [2, 16, 4], strides = [1, 1, 1]} : vector<2x32x4xf32> to vector<2x16x4xf32>
    %60 = vector.extract_strided_slice %49 {offsets = [0, 10, 0], sizes = [2, 16, 4], strides = [1, 1, 1]} : vector<2x32x4xf32> to vector<2x16x4xf32>
    %61 = vector.extract_strided_slice %49 {offsets = [0, 11, 0], sizes = [2, 16, 4], strides = [1, 1, 1]} : vector<2x32x4xf32> to vector<2x16x4xf32>
    %62 = vector.extract_strided_slice %49 {offsets = [0, 12, 0], sizes = [2, 16, 4], strides = [1, 1, 1]} : vector<2x32x4xf32> to vector<2x16x4xf32>
    %63 = vector.extract_strided_slice %49 {offsets = [0, 13, 0], sizes = [2, 16, 4], strides = [1, 1, 1]} : vector<2x32x4xf32> to vector<2x16x4xf32>
    %64 = vector.extract_strided_slice %49 {offsets = [0, 14, 0], sizes = [2, 16, 4], strides = [1, 1, 1]} : vector<2x32x4xf32> to vector<2x16x4xf32>
    %65 = vector.extract_strided_slice %49 {offsets = [0, 15, 0], sizes = [2, 16, 4], strides = [1, 1, 1]} : vector<2x32x4xf32> to vector<2x16x4xf32>
    %66 = tpu.concatenate %51, %52, %53, %54, %55, %56, %57, %58, %59, %60, %61, %62, %63, %64, %65 in 2 : vector<2x16x4xf32>, vector<2x16x4xf32>, vector<2x16x4xf32>, vector<2x16x4xf32>, vector<2x16x4xf32>, vector<2x16x4xf32>, vector<2x16x4xf32>, vector<2x16x4xf32>, vector<2x16x4xf32>, vector<2x16x4xf32>, vector<2x16x4xf32>, vector<2x16x4xf32>, vector<2x16x4xf32>, vector<2x16x4xf32>, vector<2x16x4xf32> -> vector<2x16x60xf32>
    %cst_21 = arith.constant dense<0.000000e+00> : vector<2x16x4xf32>
    %67 = tpu.matmul %66, %50, %cst_21 {dimension_numbers = #tpu.dot_dimension_numbers<[2], [0], [0, 1], [1], [0, 0, 0, 1, 1, 1], [], []>} : vector<2x16x60xf32>, vector<60x4xf32>, vector<2x16x4xf32> -> vector<2x16x4xf32>
    %c0_22 = arith.constant 0 : index
    %c0_23 = arith.constant 0 : index
    %c0_24 = arith.constant 0 : index
    %68 = vector.load %arg5[%c0_22, %c0_23, %c0_24] : memref<1x1x4xf32, #tpu.memory_space<vmem>>, vector<1x1x4xf32>
    %c0_25 = arith.constant 0 : index
    %c0_26 = arith.constant 0 : index
    %c0_27 = arith.constant 0 : index
    %69 = vector.load %arg6[%c0_25, %c0_26, %c0_27] : memref<1x1x4xf32, #tpu.memory_space<vmem>>, vector<1x1x4xf32>
    %cst_28 = arith.constant dense<0.000000e+00> : vector<4xf32>
    %70 = vector.multi_reduction <add>, %67, %cst_28 [0, 1] : vector<2x16x4xf32> to vector<4xf32>
    %71 = vector.shape_cast %70 : vector<4xf32> to vector<1x1x4xf32>
    %72 = arith.mulf %67, %67 : vector<2x16x4xf32>
    %cst_29 = arith.constant dense<0.000000e+00> : vector<4xf32>
    %73 = vector.multi_reduction <add>, %72, %cst_29 [0, 1] : vector<2x16x4xf32> to vector<4xf32>
    %74 = vector.shape_cast %73 : vector<4xf32> to vector<1x1x4xf32>
    %cst_30 = arith.constant 3.125000e-02 : f32
    %75 = vector.broadcast %cst_30 : f32 to vector<1x1x4xf32>
    %76 = arith.mulf %71, %75 : vector<1x1x4xf32>
    %cst_31 = arith.constant 3.125000e-02 : f32
    %77 = vector.broadcast %cst_31 : f32 to vector<1x1x4xf32>
    %78 = arith.mulf %74, %77 : vector<1x1x4xf32>
    %79 = arith.mulf %76, %76 : vector<1x1x4xf32>
    %80 = arith.subf %78, %79 : vector<1x1x4xf32>
    %cst_32 = arith.constant 0.000000e+00 : f32
    %81 = vector.broadcast %cst_32 : f32 to vector<1x1x4xf32>
    %82 = arith.maximumf %80, %81 : vector<1x1x4xf32>
    %cst_33 = arith.constant 9.99999974E-6 : f32
    %83 = vector.broadcast %cst_33 : f32 to vector<1x1x4xf32>
    %84 = arith.addf %82, %83 : vector<1x1x4xf32>
    %85 = math.rsqrt %84 : vector<1x1x4xf32>
    %86 = arith.mulf %68, %85 : vector<1x1x4xf32>
    %87 = arith.mulf %76, %86 : vector<1x1x4xf32>
    %88 = arith.subf %69, %87 : vector<1x1x4xf32>
    %89 = vector.broadcast %86 : vector<1x1x4xf32> to vector<2x16x4xf32>
    %90 = arith.mulf %67, %89 : vector<2x16x4xf32>
    %91 = vector.broadcast %88 : vector<1x1x4xf32> to vector<2x16x4xf32>
    %92 = arith.addf %90, %91 : vector<2x16x4xf32>
    %93 = arith.addf %92, %0 : vector<2x16x4xf32>
    %cst_34 = arith.constant 0.000000e+00 : f32
    %94 = vector.broadcast %cst_34 : f32 to vector<2x16x4xf32>
    %95 = arith.maximumf %93, %94 : vector<2x16x4xf32>
    %c0_35 = arith.constant 0 : index
    %c0_36 = arith.constant 0 : index
    %c0_37 = arith.constant 0 : index
    %96 = vector.load %arg7[%c0_35, %c0_36, %c0_37] : memref<2x16x4xf32, #tpu.memory_space<vmem>>, vector<2x16x4xf32>
    tpu.vector_store %arg7[%c0_35, %c0_36, %c0_37], %95 {strides = array<i32>} : memref<2x16x4xf32, #tpu.memory_space<vmem>>, vector<2x16x4xf32>,
    return
  }
}

</mosaic_0001>

<llo_original>
// kernel: tpu_custom_call.1
$region0: #{tpu_custom_call.1}
  #allocation0 [shape = 'u32[]', space=smem, size = 0x4, offset = 0x4, fixed_abs, tag = 'smem constant byte address 0x4 - core index']
  #allocation1 [shape = 'u32[144,128]{1,0:T(1,128)}', space=vmem, size = 0x12000, scoped, tag = 'internal scratch']
  %s0 = inlined_call_operand.vmem [shape: f32[2,16,4], index: 0, kind: input, shape index: {}]
  %s1 = inlined_call_operand.vmem [shape: f32[60,4], index: 1, kind: input, shape index: {}]
  %s2 = inlined_call_operand.vmem [shape: f32[1,1,4], index: 2, kind: input, shape index: {}]
  %s3 = inlined_call_operand.vmem [shape: f32[1,1,4], index: 3, kind: input, shape index: {}]
  %s4 = inlined_call_operand.vmem [shape: f32[60,4], index: 4, kind: input, shape index: {}]
  %s5 = inlined_call_operand.vmem [shape: f32[1,1,4], index: 5, kind: input, shape index: {}]
  %s6 = inlined_call_operand.vmem [shape: f32[1,1,4], index: 6, kind: input, shape index: {}]
  %s7 = inlined_call_operand.vmem [shape: f32[2,16,4], index: 7, kind: output, shape index: {}]
  %s8 = sld [smem:[#allocation0]]
  $region38: #{tpu_custom_call.1} parent=0
    _
  %s10 = ssub.s32 1, %s8
  %s11 = scalar_select 0, %s10, %s8
  // Predicated region
  $region2: #{tpu_custom_call.1} parent=0 // pred_check
    _
  $region3: #{tpu_custom_call.1} parent=0 // pred_check_branch
    %13 = sbr.rel (0) target = $region5
  $region4: #{tpu_custom_call.1} parent=0 // pred_region
    _
  $region5: #{tpu_custom_call.1} parent=0 // pred_fallthru
    _
  // Predicated region
  $region6: #{tpu_custom_call.1} parent=0 // pred_check
    _
  $region7: #{tpu_custom_call.1} parent=0 // pred_check_branch
    %15 = sbr.rel (0) target = $region9
  $region8: #{tpu_custom_call.1} parent=0 // pred_region
    _
  $region9: #{tpu_custom_call.1} parent=0 // pred_fallthru
    _
  // Predicated region
  $region10: #{tpu_custom_call.1} parent=0 // pred_check
    _
  $region11: #{tpu_custom_call.1} parent=0 // pred_check_branch
    %17 = sbr.rel (0) target = $region13
  $region12: #{tpu_custom_call.1} parent=0 // pred_region
    _
  $region13: #{tpu_custom_call.1} parent=0 // pred_fallthru
    _
  // Predicated region
  $region14: #{tpu_custom_call.1} parent=0 // pred_check
    _
  $region15: #{tpu_custom_call.1} parent=0 // pred_check_branch
    %19 = sbr.rel (0) target = $region17
  $region16: #{tpu_custom_call.1} parent=0 // pred_region
    _
  $region17: #{tpu_custom_call.1} parent=0 // pred_fallthru
    _
  // Predicated region
  $region18: #{tpu_custom_call.1} parent=0 // pred_check
    _
  $region19: #{tpu_custom_call.1} parent=0 // pred_check_branch
    %21 = sbr.rel (0) target = $region21
  $region20: #{tpu_custom_call.1} parent=0 // pred_region
    _
  $region21: #{tpu_custom_call.1} parent=0 // pred_fallthru
    _
  // Predicated region
  $region22: #{tpu_custom_call.1} parent=0 // pred_check
    _
  $region23: #{tpu_custom_call.1} parent=0 // pred_check_branch
    %23 = sbr.rel (0) target = $region25
  $region24: #{tpu_custom_call.1} parent=0 // pred_region
    _
  $region25: #{tpu_custom_call.1} parent=0 // pred_fallthru
    _
  // Predicated region
  $region26: #{tpu_custom_call.1} parent=0 // pred_check
    _
  $region27: #{tpu_custom_call.1} parent=0 // pred_check_branch
    %25 = sbr.rel (0) target = $region29
  $region28: #{tpu_custom_call.1} parent=0 // pred_region
    _
  $region29: #{tpu_custom_call.1} parent=0 // pred_fallthru
    _
  %v26 = vld [vmem:[%s0] sm:$0xff]
  %v27 = vld [vmem:[%s0 + $0x8] sm:$0xff]
  %v28 = vld [vmem:[%s0 + $0x10] sm:$0xff]
  %v29 = vld [vmem:[%s0 + $0x18] sm:$0xff]
  %v30 = vld [vmem:[%s1] sm:$0xff]
  %v31 = vld [vmem:[%s1 + $0x8] sm:$0xff]
  %v32 = vld [vmem:[%s1 + $0x10] sm:$0xff]
  %v33 = vld [vmem:[%s1 + $0x18] sm:$0xff]
  %v34 = vld [vmem:[%s1 + $0x20] sm:$0xff]
  %v35 = vld [vmem:[%s1 + $0x28] sm:$0xff]
  %v36 = vld [vmem:[%s1 + $0x30] sm:$0xff]
  %v37 = vld [vmem:[%s1 + $0x38] sm:$0xf]
  %vm43 = vcmask 1046528
  %v44 = vrot.slane 0.0, 1
  %v45 = vrot.slane %v26, 1
  %v46 = vsel %vm43, %v44, %v45
  %v47 = vrot.slane %v27, 1
  %v48 = vsel %vm43, %v45, %v47
  %v49 = vrot.slane %v28, 1
  %v50 = vsel %vm43, %v44, %v49
  %v51 = vrot.slane %v29, 1
  %v52 = vsel %vm43, %v49, %v51
  %53 = vrot.lane.b32.xlu0 %v46, 4
  %v54 = vpop.permute.xlu0 %53
  %55 = vrot.lane.b32.xlu0 %v48, 4
  %v56 = vpop.permute.xlu0 %55
  %57 = vrot.lane.b32.xlu0 %v47, 4
  %v58 = vpop.permute.xlu0 %57
  %59 = vrot.lane.b32.xlu0 %v50, 4
  %v60 = vpop.permute.xlu0 %59
  %61 = vrot.lane.b32.xlu0 %v52, 4
  %v62 = vpop.permute.xlu0 %61
  %63 = vrot.lane.b32.xlu0 %v51, 4
  %v64 = vpop.permute.xlu0 %63
  %vm71 = vcmask 1045504
  %v72 = vrot.slane 0.0, 2
  %v73 = vrot.slane %v26, 2
  %v74 = vsel %vm71, %v72, %v73
  %v75 = vrot.slane %v27, 2
  %v76 = vsel %vm71, %v73, %v75
  %v77 = vrot.slane %v28, 2
  %v78 = vsel %vm71, %v72, %v77
  %v79 = vrot.slane %v29, 2
  %v80 = vsel %vm71, %v77, %v79
  %81 = vrot.lane.b32.xlu0 %v74, 8
  %v82 = vpop.permute.xlu0 %81
  %83 = vrot.lane.b32.xlu0 %v76, 8
  %v84 = vpop.permute.xlu0 %83
  %85 = vrot.lane.b32.xlu0 %v75, 8
  %v86 = vpop.permute.xlu0 %85
  %87 = vrot.lane.b32.xlu0 %v78, 8
  %v88 = vpop.permute.xlu0 %87
  %89 = vrot.lane.b32.xlu0 %v80, 8
  %v90 = vpop.permute.xlu0 %89
  %91 = vrot.lane.b32.xlu0 %v79, 8
  %v92 = vpop.permute.xlu0 %91
  %vm99 = vcmask 1044480
  %v100 = vrot.slane 0.0, 3
  %v101 = vrot.slane %v26, 3
  %v102 = vsel %vm99, %v100, %v101
  %v103 = vrot.slane %v27, 3
  %v104 = vsel %vm99, %v101, %v103
  %v105 = vrot.slane %v28, 3
  %v106 = vsel %vm99, %v100, %v105
  %v107 = vrot.slane %v29, 3
  %v108 = vsel %vm99, %v105, %v107
  %109 = vrot.lane.b32.xlu0 %v102, 12
  %v110 = vpop.permute.xlu0 %109
  %111 = vrot.lane.b32.xlu0 %v104, 12
  %v112 = vpop.permute.xlu0 %111
  %113 = vrot.lane.b32.xlu0 %v103, 12
  %v114 = vpop.permute.xlu0 %113
  %115 = vrot.lane.b32.xlu0 %v106, 12
  %v116 = vpop.permute.xlu0 %115
  %117 = vrot.lane.b32.xlu0 %v108, 12
  %v118 = vpop.permute.xlu0 %117
  %119 = vrot.lane.b32.xlu0 %v107, 12
  %v120 = vpop.permute.xlu0 %119
  %vm127 = vcmask 1043456
  %v128 = vrot.slane 0.0, 4
  %v129 = vrot.slane %v26, 4
  %v130 = vsel %vm127, %v128, %v129
  %v131 = vrot.slane %v27, 4
  %v132 = vsel %vm127, %v129, %v131
  %v133 = vrot.slane %v28, 4
  %v134 = vsel %vm127, %v128, %v133
  %v135 = vrot.slane %v29, 4
  %v136 = vsel %vm127, %v133, %v135
  %137 = vrot.lane.b32.xlu0 %v130, 16
  %v138 = vpop.permute.xlu0 %137
  %139 = vrot.lane.b32.xlu0 %v132, 16
  %v140 = vpop.permute.xlu0 %139
  %141 = vrot.lane.b32.xlu0 %v131, 16
  %v142 = vpop.permute.xlu0 %141
  %143 = vrot.lane.b32.xlu0 %v134, 16
  %v144 = vpop.permute.xlu0 %143
  %145 = vrot.lane.b32.xlu0 %v136, 16
  %v146 = vpop.permute.xlu0 %145
  %147 = vrot.lane.b32.xlu0 %v135, 16
  %v148 = vpop.permute.xlu0 %147
  %vm155 = vcmask 1042432
  %v156 = vrot.slane 0.0, 5
  %v157 = vrot.slane %v26, 5
  %v158 = vsel %vm155, %v156, %v157
  %v159 = vrot.slane %v27, 5
  %v160 = vsel %vm155, %v157, %v159
  %v161 = vrot.slane %v28, 5
  %v162 = vsel %vm155, %v156, %v161
  %v163 = vrot.slane %v29, 5
  %v164 = vsel %vm155, %v161, %v163
  %165 = vrot.lane.b32.xlu0 %v158, 20
  %v166 = vpop.permute.xlu0 %165
  %167 = vrot.lane.b32.xlu0 %v160, 20
  %v168 = vpop.permute.xlu0 %167
  %169 = vrot.lane.b32.xlu0 %v159, 20
  %v170 = vpop.permute.xlu0 %169
  %171 = vrot.lane.b32.xlu0 %v162, 20
  %v172 = vpop.permute.xlu0 %171
  %173 = vrot.lane.b32.xlu0 %v164, 20
  %v174 = vpop.permute.xlu0 %173
  %175 = vrot.lane.b32.xlu0 %v163, 20
  %v176 = vpop.permute.xlu0 %175
  %vm183 = vcmask 1041408
  %v184 = vrot.slane 0.0, 6
  %v185 = vrot.slane %v26, 6
  %v186 = vsel %vm183, %v184, %v185
  %v187 = vrot.slane %v27, 6
  %v188 = vsel %vm183, %v185, %v187
  %v189 = vrot.slane %v28, 6
  %v190 = vsel %vm183, %v184, %v189
  %v191 = vrot.slane %v29, 6
  %v192 = vsel %vm183, %v189, %v191
  %193 = vrot.lane.b32.xlu0 %v186, 24
  %v194 = vpop.permute.xlu0 %193
  %195 = vrot.lane.b32.xlu0 %v188, 24
  %v196 = vpop.permute.xlu0 %195
  %197 = vrot.lane.b32.xlu0 %v187, 24
  %v198 = vpop.permute.xlu0 %197
  %199 = vrot.lane.b32.xlu0 %v190, 24
  %v200 = vpop.permute.xlu0 %199
  %201 = vrot.lane.b32.xlu0 %v192, 24
  %v202 = vpop.permute.xlu0 %201
  %203 = vrot.lane.b32.xlu0 %v191, 24
  %v204 = vpop.permute.xlu0 %203
  %vm211 = vcmask 1040384
  %v212 = vrot.slane %v26, 7
  %v213 = vrot.slane %v27, 7
  %v214 = vsel %vm211, %v212, %v213
  %v215 = vrot.slane %v28, 7
  %v216 = vrot.slane %v29, 7
  %v217 = vsel %vm211, %v215, %v216
  %218 = vrot.lane.b32.xlu0 %v212, 28
  %v219 = vpop.permute.xlu0 %218
  %220 = vrot.lane.b32.xlu0 %v214, 28
  %v221 = vpop.permute.xlu0 %220
  %222 = vrot.lane.b32.xlu0 %v213, 28
  %v223 = vpop.permute.xlu0 %222
  %224 = vrot.lane.b32.xlu0 %v215, 28
  %v225 = vpop.permute.xlu0 %224
  %226 = vrot.lane.b32.xlu0 %v217, 28
  %v227 = vpop.permute.xlu0 %226
  %228 = vrot.lane.b32.xlu0 %v216, 28
  %v229 = vpop.permute.xlu0 %228
  %236 = vrot.lane.b32.xlu0 %v26, 32
  %v237 = vpop.permute.xlu0 %236
  %238 = vrot.lane.b32.xlu0 %v27, 32
  %v239 = vpop.permute.xlu0 %238
  %240 = vrot.lane.b32.xlu0 0.0, 32
  %v241 = vpop.permute.xlu0 %240
  %242 = vrot.lane.b32.xlu0 %v28, 32
  %v243 = vpop.permute.xlu0 %242
  %244 = vrot.lane.b32.xlu0 %v29, 32
  %v245 = vpop.permute.xlu0 %244
  %v251 = vsel %vm43, %v47, %v44
  %v252 = vsel %vm43, %v51, %v44
  %253 = vrot.lane.b32.xlu0 %v48, 36
  %v254 = vpop.permute.xlu0 %253
  %255 = vrot.lane.b32.xlu0 %v251, 36
  %v256 = vpop.permute.xlu0 %255
  %257 = vrot.lane.b32.xlu0 %v44, 36
  %v258 = vpop.permute.xlu0 %257
  %259 = vrot.lane.b32.xlu0 %v52, 36
  %v260 = vpop.permute.xlu0 %259
  %261 = vrot.lane.b32.xlu0 %v252, 36
  %v262 = vpop.permute.xlu0 %261
  %v268 = vsel %vm71, %v75, %v72
  %v269 = vsel %vm71, %v79, %v72
  %270 = vrot.lane.b32.xlu0 %v76, 40
  %v271 = vpop.permute.xlu0 %270
  %272 = vrot.lane.b32.xlu0 %v268, 40
  %v273 = vpop.permute.xlu0 %272
  %274 = vrot.lane.b32.xlu0 %v72, 40
  %v275 = vpop.permute.xlu0 %274
  %276 = vrot.lane.b32.xlu0 %v80, 40
  %v277 = vpop.permute.xlu0 %276
  %278 = vrot.lane.b32.xlu0 %v269, 40
  %v279 = vpop.permute.xlu0 %278
  %v285 = vsel %vm99, %v103, %v100
  %v286 = vsel %vm99, %v107, %v100
  %287 = vrot.lane.b32.xlu0 %v104, 44
  %v288 = vpop.permute.xlu0 %287
  %289 = vrot.lane.b32.xlu0 %v285, 44
  %v290 = vpop.permute.xlu0 %289
  %291 = vrot.lane.b32.xlu0 %v100, 44
  %v292 = vpop.permute.xlu0 %291
  %293 = vrot.lane.b32.xlu0 %v108, 44
  %v294 = vpop.permute.xlu0 %293
  %295 = vrot.lane.b32.xlu0 %v286, 44
  %v296 = vpop.permute.xlu0 %295
  %v302 = vsel %vm127, %v131, %v128
  %v303 = vsel %vm127, %v135, %v128
  %304 = vrot.lane.b32.xlu0 %v132, 48
  %v305 = vpop.permute.xlu0 %304
  %306 = vrot.lane.b32.xlu0 %v302, 48
  %v307 = vpop.permute.xlu0 %306
  %308 = vrot.lane.b32.xlu0 %v128, 48
  %v309 = vpop.permute.xlu0 %308
  %310 = vrot.lane.b32.xlu0 %v136, 48
  %v311 = vpop.permute.xlu0 %310
  %312 = vrot.lane.b32.xlu0 %v303, 48
  %v313 = vpop.permute.xlu0 %312
  %v319 = vsel %vm155, %v159, %v156
  %v320 = vsel %vm155, %v163, %v156
  %321 = vrot.lane.b32.xlu0 %v160, 52
  %v322 = vpop.permute.xlu0 %321
  %323 = vrot.lane.b32.xlu0 %v319, 52
  %v324 = vpop.permute.xlu0 %323
  %325 = vrot.lane.b32.xlu0 %v156, 52
  %v326 = vpop.permute.xlu0 %325
  %327 = vrot.lane.b32.xlu0 %v164, 52
  %v328 = vpop.permute.xlu0 %327
  %329 = vrot.lane.b32.xlu0 %v320, 52
  %v330 = vpop.permute.xlu0 %329
  %v336 = vsel %vm183, %v187, %v184
  %v337 = vsel %vm183, %v191, %v184
  %338 = vrot.lane.b32.xlu0 %v188, 56
  %v339 = vpop.permute.xlu0 %338
  %340 = vrot.lane.b32.xlu0 %v336, 56
  %v341 = vpop.permute.xlu0 %340
  %342 = vrot.lane.b32.xlu0 %v184, 56
  %v343 = vpop.permute.xlu0 %342
  %344 = vrot.lane.b32.xlu0 %v192, 56
  %v345 = vpop.permute.xlu0 %344
  %346 = vrot.lane.b32.xlu0 %v337, 56
  %v347 = vpop.permute.xlu0 %346
  %vm353 = vcmask 31744
  %v354 = vsel %vm353, 0.0, %v54
  %v355 = vsel %vm353, %v26, %v56
  %v356 = vsel %vm353, %v27, %v58
  %v357 = vsel %vm353, 0.0, %v60
  %v358 = vsel %vm353, %v28, %v62
  %v359 = vsel %vm353, %v29, %v64
  %vm360 = vcmask 64512
  %v361 = vsel %vm360, %v354, %v82
  %v362 = vsel %vm360, %v355, %v84
  %v363 = vsel %vm360, %v356, %v86
  %v364 = vsel %vm360, %v357, %v88
  %v365 = vsel %vm360, %v358, %v90
  %v366 = vsel %vm360, %v359, %v92
  %vm367 = vcmask 97280
  %v368 = vsel %vm367, %v361, %v110
  %v369 = vsel %vm367, %v362, %v112
  %v370 = vsel %vm367, %v363, %v114
  %v371 = vsel %vm367, %v364, %v116
  %v372 = vsel %vm367, %v365, %v118
  %v373 = vsel %vm367, %v366, %v120
  %vm374 = vcmask 130048
  %v375 = vsel %vm374, %v368, %v138
  %v376 = vsel %vm374, %v369, %v140
  %v377 = vsel %vm374, %v370, %v142
  %v378 = vsel %vm374, %v371, %v144
  %v379 = vsel %vm374, %v372, %v146
  %v380 = vsel %vm374, %v373, %v148
  %vm381 = vcmask 162816
  %v382 = vsel %vm381, %v375, %v166
  %v383 = vsel %vm381, %v376, %v168
  %v384 = vsel %vm381, %v377, %v170
  %v385 = vsel %vm381, %v378, %v172
  %v386 = vsel %vm381, %v379, %v174
  %v387 = vsel %vm381, %v380, %v176
  %vm388 = vcmask 195584
  %v389 = vsel %vm388, %v382, %v194
  %v390 = vsel %vm388, %v383, %v196
  %v391 = vsel %vm388, %v384, %v198
  %v392 = vsel %vm388, %v385, %v200
  %v393 = vsel %vm388, %v386, %v202
  %v394 = vsel %vm388, %v387, %v204
  %vm395 = vcmask 228352
  %v396 = vsel %vm395, %v389, %v219
  %v397 = vsel %vm395, %v390, %v221
  %v398 = vsel %vm395, %v391, %v223
  %v399 = vsel %vm395, %v392, %v225
  %v400 = vsel %vm395, %v393, %v227
  %v401 = vsel %vm395, %v394, %v229
  %vm402 = vcmask 261120
  %v403 = vsel %vm402, %v396, %v237
  %v404 = vsel %vm402, %v397, %v239
  %v405 = vsel %vm402, %v398, %v241
  %v406 = vsel %vm402, %v399, %v243
  %v407 = vsel %vm402, %v400, %v245
  %v408 = vsel %vm402, %v401, %v241
  %vm409 = vcmask 293888
  %v410 = vsel %vm409, %v403, %v254
  %v411 = vsel %vm409, %v404, %v256
  %v412 = vsel %vm409, %v405, %v258
  %v413 = vsel %vm409, %v406, %v260
  %v414 = vsel %vm409, %v407, %v262
  %v415 = vsel %vm409, %v408, %v258
  %vm416 = vcmask 326656
  %v417 = vsel %vm416, %v410, %v271
  %v418 = vsel %vm416, %v411, %v273
  %v419 = vsel %vm416, %v412, %v275
  %v420 = vsel %vm416, %v413, %v277
  %v421 = vsel %vm416, %v414, %v279
  %v422 = vsel %vm416, %v415, %v275
  %vm423 = vcmask 359424
  %v424 = vsel %vm423, %v417, %v288
  %v425 = vsel %vm423, %v418, %v290
  %v426 = vsel %vm423, %v419, %v292
  %v427 = vsel %vm423, %v420, %v294
  %v428 = vsel %vm423, %v421, %v296
  %v429 = vsel %vm423, %v422, %v292
  %vm430 = vcmask 392192
  %v431 = vsel %vm430, %v424, %v305
  %v432 = vsel %vm430, %v425, %v307
  %v433 = vsel %vm430, %v426, %v309
  %v434 = vsel %vm430, %v427, %v311
  %v435 = vsel %vm430, %v428, %v313
  %v436 = vsel %vm430, %v429, %v309
  %vm437 = vcmask 424960
  %v438 = vsel %vm437, %v431, %v322
  %v439 = vsel %vm437, %v432, %v324
  %v440 = vsel %vm437, %v433, %v326
  %v441 = vsel %vm437, %v434, %v328
  %v442 = vsel %vm437, %v435, %v330
  %v443 = vsel %vm437, %v436, %v326
  %vm444 = vcmask 457728
  %v445 = vsel %vm444, %v438, %v339
  %v446 = vsel %vm444, %v439, %v341
  %v447 = vsel %vm444, %v440, %v343
  %v448 = vsel %vm444, %v441, %v345
  %v449 = vsel %vm444, %v442, %v347
  %v450 = vsel %vm444, %v443, %v343
  %v457 = vrot.slane %v445, 1
  %v458 = vrot.slane %v446, 1
  %v459 = vsel %vm43, %v457, %v458
  %v460 = vrot.slane %v447, 1
  %v461 = vsel %vm43, %v458, %v460
  %v462 = vrot.slane %v448, 1
  %v463 = vrot.slane %v449, 1
  %v464 = vsel %vm43, %v462, %v463
  %v465 = vrot.slane %v450, 1
  %v466 = vsel %vm43, %v463, %v465
  %vm467 = vcmask 490496
  %v468 = vsel %vm467, %v459, 0
  %v470 = vsel %vm467, %v461, 0
  %v472 = vsel %vm467, %v464, 0
  %v474 = vsel %vm467, %v466, 0
  %v477 = vsel %vm127, %v37, 0
  %479 = vmatprep.subr.mxu0 0.0
  %480 = vmatpush1.msra.mxu0 %v30
  %481 = vmatprep.subr.mxu0 0.0
  %482 = vmatpush1.msra.mxu0 %v31
  %483 = vmatprep.subr.mxu0 0.0
  %484 = vmatpush1.msra.mxu0 %v32
  %485 = vmatprep.subr.mxu0 0.0
  %486 = vmatpush1.msra.mxu0 %v33
  %487 = vmatprep.subr.mxu0 0.0
  %488 = vmatpush1.msra.mxu0 %v34
  %489 = vmatprep.subr.mxu0 0.0
  %490 = vmatpush1.msra.mxu0 %v35
  %491 = vmatprep.subr.mxu0 0.0
  %492 = vmatpush1.msra.mxu0 %v36
  %493 = vmatprep.subr.mxu0 0.0
  %494 = vmatpush1.msra.mxu0 %v477
  %495 = vmatprep.subr.mxu0 0.0
  %496 = vmatpush1.msra.mxu0 0.0
  %497 = vmatprep.subr.mxu0 0.0
  %498 = vmatpush1.msra.mxu0 0.0
  %499 = vmatprep.subr.mxu0 0.0
  %500 = vmatpush1.msra.mxu0 0.0
  %501 = vmatprep.subr.mxu0 0.0
  %502 = vmatpush1.msra.mxu0 0.0
  %503 = vmatprep.subr.mxu0 0.0
  %504 = vmatpush1.msra.mxu0 0.0
  %505 = vmatprep.subr.mxu0 0.0
  %506 = vmatpush1.msra.mxu0 0.0
  %507 = vmatprep.subr.mxu0 0.0
  %508 = vmatpush1.msra.mxu0 0.0
  %509 = vmatprep.subr.mxu0 0.0
  %510 = vmatpush1.msra.mxu0 0.0
  %511 = vmatprep.subr.mxu0 0.0
  %512 = vmatpush1.msra.mxu0 0.0
  %513 = vmatprep.subr.mxu0 0.0
  %514 = vmatpush1.msra.mxu0 0.0
  %515 = vmatprep.subr.mxu0 0.0
  %516 = vmatpush1.msra.mxu0 0.0
  %517 = vmatprep.subr.mxu0 0.0
  %518 = vmatpush1.msra.mxu0 0.0
  %519 = vmatprep.subr.mxu0 0.0
  %520 = vmatpush1.msra.mxu0 0.0
  %521 = vmatprep.subr.mxu0 0.0
  %522 = vmatpush1.msra.mxu0 0.0
  %523 = vmatprep.subr.mxu0 0.0
  %524 = vmatpush1.msra.mxu0 0.0
  %525 = vmatprep.subr.mxu0 0.0
  %526 = vmatpush1.msra.mxu0 0.0
  %527 = vmatprep.subr.mxu0 0.0
  %528 = vmatpush1.msra.mxu0 0.0
  %529 = vmatprep.subr.mxu0 0.0
  %530 = vmatpush1.msra.mxu0 0.0
  %531 = vmatprep.subr.mxu0 0.0
  %532 = vmatpush1.msra.mxu0 0.0
  %533 = vmatprep.subr.mxu0 0.0
  %534 = vmatpush1.msra.mxu0 0.0
  %535 = vmatprep.subr.mxu0 0.0
  %536 = vmatpush1.msra.mxu0 0.0
  %537 = vmatprep.subr.mxu0 0.0
  %538 = vmatpush1.msra.mxu0 0.0
  %539 = vmatprep.subr.mxu0 0.0
  %540 = vmatpush1.msra.mxu0 0.0
  %541 = vmatprep.subr.mxu0 0.0
  %542 = vmatpush1.msra.mxu0 0.0
  %543 = vmatprep.mubr.f32.mxu0 0.0
  %544 = vmatmul.mubr.f32.gmra.mrb[0].mxu0 %v468
  %v545 = vpop.f32.mrb[0].mxu0
  %v546 = vadd.f32 0.0, %v545
  %v547 = vpop.f32.mrb[0].mxu0
  %548 = vmatprep.mubr.f32.mxu0 0.0
  %549 = vmatmul.mubr.f32.gmra.mrb[0].mxu0 %v470
  %v550 = vpop.f32.mrb[0].mxu0
  %v551 = vadd.f32 0.0, %v550
  %v552 = vpop.f32.mrb[0].mxu0
  %553 = vmatprep.mubr.f32.mxu0 0.0
  %554 = vmatmul.mubr.f32.gmra.mrb[0].mxu0 %v472
  %v555 = vpop.f32.mrb[0].mxu0
  %v556 = vadd.f32 0.0, %v555
  %v557 = vpop.f32.mrb[0].mxu0
  %558 = vmatprep.mubr.f32.mxu0 0.0
  %559 = vmatmul.mubr.f32.gmra.mrb[0].mxu0 %v474
  %v560 = vpop.f32.mrb[0].mxu0
  %v561 = vadd.f32 0.0, %v560
  %v562 = vpop.f32.mrb[0].mxu0
  %563 = vdwg.mxu0
  %v564 = vld [vmem:[%s2] sm:$0x1]
  %v565 = vld [vmem:[%s3] sm:$0x1]
  %v566 = vsel %vm353, %v546, 0.0
  %v567 = vsel %vm353, %v551, 0.0
  %v568 = vadd.f32 %v566, %v567
  %v569 = vsel %vm353, %v556, 0.0
  %v570 = vadd.f32 %v568, %v569
  %v571 = vsel %vm353, %v561, 0.0
  %v572 = vadd.f32 %v570, %v571
  %v573 = vrot.slane %v572, 4
  %v574 = vadd.f32 %v572, %v573
  %v575 = vrot.slane %v574, 2
  %v576 = vadd.f32 %v574, %v575
  %v577 = vrot.slane %v576, 1
  %v578 = vadd.f32 %v576, %v577
  %v579 = vmul.f32 %v546, %v546
  %v580 = vmul.f32 %v551, %v551
  %v581 = vmul.f32 %v556, %v556
  %v582 = vmul.f32 %v561, %v561
  %v583 = vsel %vm353, %v579, 0.0
  %v584 = vsel %vm353, %v580, 0.0
  %v585 = vadd.f32 %v583, %v584
  %v586 = vsel %vm353, %v581, 0.0
  %v587 = vadd.f32 %v585, %v586
  %v588 = vsel %vm353, %v582, 0.0
  %v589 = vadd.f32 %v587, %v588
  %v590 = vrot.slane %v589, 4
  %v591 = vadd.f32 %v589, %v590
  %v592 = vrot.slane %v591, 2
  %v593 = vadd.f32 %v591, %v592
  %v594 = vrot.slane %v593, 1
  %v595 = vadd.f32 %v593, %v594
  %v596 = vmul.f32 %v578, 0.03125
  %v597 = vmul.f32 %v595, 0.03125
  %v598 = vmul.f32 %v596, %v596
  %v599 = vsub.f32 %v597, %v598
  %v600 = vmax.f32 %v599, 0.0
  %v601 = vadd.f32 %v600, 1e-05
  %v602 = vrsqrt.pop %v601
  %v603 = vmul.f32 %v564, %v602
  %v604 = vmul.f32 %v596, %v603
  %v605 = vsub.f32 %v565, %v604
  %v607 = vlaneseq
  %v608 = vshrl.u32 %v607, 7
  %v609 = vsub.s32 0, %v608
  %v610 = vrot.slane %v603, %v609
  %v612 = vmul.f32 %v546, %v610
  %v613 = vmul.f32 %v551, %v610
  %v614 = vmul.f32 %v556, %v610
  %v615 = vmul.f32 %v561, %v610
  %v617 = vlaneseq
  %v618 = vshrl.u32 %v617, 7
  %v619 = vsub.s32 0, %v618
  %v620 = vrot.slane %v605, %v619
  %v622 = vadd.f32 %v612, %v620
  %v623 = vadd.f32 %v613, %v620
  %v624 = vadd.f32 %v614, %v620
  %v625 = vadd.f32 %v615, %v620
  %v626 = vmax.f32 %v622, 0.0
  %v627 = vmax.f32 %v623, 0.0
  %v628 = vmax.f32 %v624, 0.0
  %v629 = vmax.f32 %v625, 0.0
  %v630 = vld [vmem:[%s4] sm:$0xff]
  %v631 = vld [vmem:[%s4 + $0x8] sm:$0xff]
  %v632 = vld [vmem:[%s4 + $0x10] sm:$0xff]
  %v633 = vld [vmem:[%s4 + $0x18] sm:$0xff]
  %v634 = vld [vmem:[%s4 + $0x20] sm:$0xff]
  %v635 = vld [vmem:[%s4 + $0x28] sm:$0xff]
  %v636 = vld [vmem:[%s4 + $0x30] sm:$0xff]
  %v637 = vld [vmem:[%s4 + $0x38] sm:$0xf]
  %v642 = vrot.slane %v626, 1
  %v643 = vsel %vm43, %v44, %v642
  %v644 = vrot.slane %v627, 1
  %v645 = vsel %vm43, %v642, %v644
  %v646 = vrot.slane %v628, 1
  %v647 = vsel %vm43, %v44, %v646
  %v648 = vrot.slane %v629, 1
  %v649 = vsel %vm43, %v646, %v648
  %650 = vrot.lane.b32.xlu0 %v643, 4
  %v651 = vpop.permute.xlu0 %650
  %652 = vrot.lane.b32.xlu0 %v645, 4
  %v653 = vpop.permute.xlu0 %652
  %654 = vrot.lane.b32.xlu0 %v644, 4
  %v655 = vpop.permute.xlu0 %654
  %656 = vrot.lane.b32.xlu0 %v647, 4
  %v657 = vpop.permute.xlu0 %656
  %658 = vrot.lane.b32.xlu0 %v649, 4
  %v659 = vpop.permute.xlu0 %658
  %660 = vrot.lane.b32.xlu0 %v648, 4
  %v661 = vpop.permute.xlu0 %660
  %v668 = vrot.slane %v626, 2
  %v669 = vsel %vm71, %v72, %v668
  %v670 = vrot.slane %v627, 2
  %v671 = vsel %vm71, %v668, %v670
  %v672 = vrot.slane %v628, 2
  %v673 = vsel %vm71, %v72, %v672
  %v674 = vrot.slane %v629, 2
  %v675 = vsel %vm71, %v672, %v674
  %676 = vrot.lane.b32.xlu0 %v669, 8
  %v677 = vpop.permute.xlu0 %676
  %678 = vrot.lane.b32.xlu0 %v671, 8
  %v679 = vpop.permute.xlu0 %678
  %680 = vrot.lane.b32.xlu0 %v670, 8
  %v681 = vpop.permute.xlu0 %680
  %682 = vrot.lane.b32.xlu0 %v673, 8
  %v683 = vpop.permute.xlu0 %682
  %684 = vrot.lane.b32.xlu0 %v675, 8
  %v685 = vpop.permute.xlu0 %684
  %686 = vrot.lane.b32.xlu0 %v674, 8
  %v687 = vpop.permute.xlu0 %686
  %v694 = vrot.slane %v626, 3
  %v695 = vsel %vm99, %v100, %v694
  %v696 = vrot.slane %v627, 3
  %v697 = vsel %vm99, %v694, %v696
  %v698 = vrot.slane %v628, 3
  %v699 = vsel %vm99, %v100, %v698
  %v700 = vrot.slane %v629, 3
  %v701 = vsel %vm99, %v698, %v700
  %702 = vrot.lane.b32.xlu0 %v695, 12
  %v703 = vpop.permute.xlu0 %702
  %704 = vrot.lane.b32.xlu0 %v697, 12
  %v705 = vpop.permute.xlu0 %704
  %706 = vrot.lane.b32.xlu0 %v696, 12
  %v707 = vpop.permute.xlu0 %706
  %708 = vrot.lane.b32.xlu0 %v699, 12
  %v709 = vpop.permute.xlu0 %708
  %710 = vrot.lane.b32.xlu0 %v701, 12
  %v711 = vpop.permute.xlu0 %710
  %712 = vrot.lane.b32.xlu0 %v700, 12
  %v713 = vpop.permute.xlu0 %712
  %v720 = vrot.slane %v626, 4
  %v721 = vsel %vm127, %v128, %v720
  %v722 = vrot.slane %v627, 4
  %v723 = vsel %vm127, %v720, %v722
  %v724 = vrot.slane %v628, 4
  %v725 = vsel %vm127, %v128, %v724
  %v726 = vrot.slane %v629, 4
  %v727 = vsel %vm127, %v724, %v726
  %728 = vrot.lane.b32.xlu0 %v721, 16
  %v729 = vpop.permute.xlu0 %728
  %730 = vrot.lane.b32.xlu0 %v723, 16
  %v731 = vpop.permute.xlu0 %730
  %732 = vrot.lane.b32.xlu0 %v722, 16
  %v733 = vpop.permute.xlu0 %732
  %734 = vrot.lane.b32.xlu0 %v725, 16
  %v735 = vpop.permute.xlu0 %734
  %736 = vrot.lane.b32.xlu0 %v727, 16
  %v737 = vpop.permute.xlu0 %736
  %738 = vrot.lane.b32.xlu0 %v726, 16
  %v739 = vpop.permute.xlu0 %738
  %v746 = vrot.slane %v626, 5
  %v747 = vsel %vm155, %v156, %v746
  %v748 = vrot.slane %v627, 5
  %v749 = vsel %vm155, %v746, %v748
  %v750 = vrot.slane %v628, 5
  %v751 = vsel %vm155, %v156, %v750
  %v752 = vrot.slane %v629, 5
  %v753 = vsel %vm155, %v750, %v752
  %754 = vrot.lane.b32.xlu0 %v747, 20
  %v755 = vpop.permute.xlu0 %754
  %756 = vrot.lane.b32.xlu0 %v749, 20
  %v757 = vpop.permute.xlu0 %756
  %758 = vrot.lane.b32.xlu0 %v748, 20
  %v759 = vpop.permute.xlu0 %758
  %760 = vrot.lane.b32.xlu0 %v751, 20
  %v761 = vpop.permute.xlu0 %760
  %762 = vrot.lane.b32.xlu0 %v753, 20
  %v763 = vpop.permute.xlu0 %762
  %764 = vrot.lane.b32.xlu0 %v752, 20
  %v765 = vpop.permute.xlu0 %764
  %v772 = vrot.slane %v626, 6
  %v773 = vsel %vm183, %v184, %v772
  %v774 = vrot.slane %v627, 6
  %v775 = vsel %vm183, %v772, %v774
  %v776 = vrot.slane %v628, 6
  %v777 = vsel %vm183, %v184, %v776
  %v778 = vrot.slane %v629, 6
  %v779 = vsel %vm183, %v776, %v778
  %780 = vrot.lane.b32.xlu0 %v773, 24
  %v781 = vpop.permute.xlu0 %780
  %782 = vrot.lane.b32.xlu0 %v775, 24
  %v783 = vpop.permute.xlu0 %782
  %784 = vrot.lane.b32.xlu0 %v774, 24
  %v785 = vpop.permute.xlu0 %784
  %786 = vrot.lane.b32.xlu0 %v777, 24
  %v787 = vpop.permute.xlu0 %786
  %788 = vrot.lane.b32.xlu0 %v779, 24
  %v789 = vpop.permute.xlu0 %788
  %790 = vrot.lane.b32.xlu0 %v778, 24
  %v791 = vpop.permute.xlu0 %790
  %v798 = vrot.slane %v626, 7
  %v799 = vrot.slane %v627, 7
  %v800 = vsel %vm211, %v798, %v799
  %v801 = vrot.slane %v628, 7
  %v802 = vrot.slane %v629, 7
  %v803 = vsel %vm211, %v801, %v802
  %804 = vrot.lane.b32.xlu0 %v798, 28
  %v805 = vpop.permute.xlu0 %804
  %806 = vrot.lane.b32.xlu0 %v800, 28
  %v807 = vpop.permute.xlu0 %806
  %808 = vrot.lane.b32.xlu0 %v799, 28
  %v809 = vpop.permute.xlu0 %808
  %810 = vrot.lane.b32.xlu0 %v801, 28
  %v811 = vpop.permute.xlu0 %810
  %812 = vrot.lane.b32.xlu0 %v803, 28
  %v813 = vpop.permute.xlu0 %812
  %814 = vrot.lane.b32.xlu0 %v802, 28
  %v815 = vpop.permute.xlu0 %814
  %822 = vrot.lane.b32.xlu0 %v626, 32
  %v823 = vpop.permute.xlu0 %822
  %824 = vrot.lane.b32.xlu0 %v627, 32
  %v825 = vpop.permute.xlu0 %824
  %826 = vrot.lane.b32.xlu0 %v628, 32
  %v827 = vpop.permute.xlu0 %826
  %828 = vrot.lane.b32.xlu0 %v629, 32
  %v829 = vpop.permute.xlu0 %828
  %v834 = vsel %vm43, %v644, %v44
  %v835 = vsel %vm43, %v648, %v44
  %836 = vrot.lane.b32.xlu0 %v645, 36
  %v837 = vpop.permute.xlu0 %836
  %838 = vrot.lane.b32.xlu0 %v834, 36
  %v839 = vpop.permute.xlu0 %838
  %840 = vrot.lane.b32.xlu0 %v649, 36
  %v841 = vpop.permute.xlu0 %840
  %842 = vrot.lane.b32.xlu0 %v835, 36
  %v843 = vpop.permute.xlu0 %842
  %v848 = vsel %vm71, %v670, %v72
  %v849 = vsel %vm71, %v674, %v72
  %850 = vrot.lane.b32.xlu0 %v671, 40
  %v851 = vpop.permute.xlu0 %850
  %852 = vrot.lane.b32.xlu0 %v848, 40
  %v853 = vpop.permute.xlu0 %852
  %854 = vrot.lane.b32.xlu0 %v675, 40
  %v855 = vpop.permute.xlu0 %854
  %856 = vrot.lane.b32.xlu0 %v849, 40
  %v857 = vpop.permute.xlu0 %856
  %v862 = vsel %vm99, %v696, %v100
  %v863 = vsel %vm99, %v700, %v100
  %864 = vrot.lane.b32.xlu0 %v697, 44
  %v865 = vpop.permute.xlu0 %864
  %866 = vrot.lane.b32.xlu0 %v862, 44
  %v867 = vpop.permute.xlu0 %866
  %868 = vrot.lane.b32.xlu0 %v701, 44
  %v869 = vpop.permute.xlu0 %868
  %870 = vrot.lane.b32.xlu0 %v863, 44
  %v871 = vpop.permute.xlu0 %870
  %v876 = vsel %vm127, %v722, %v128
  %v877 = vsel %vm127, %v726, %v128
  %878 = vrot.lane.b32.xlu0 %v723, 48
  %v879 = vpop.permute.xlu0 %878
  %880 = vrot.lane.b32.xlu0 %v876, 48
  %v881 = vpop.permute.xlu0 %880
  %882 = vrot.lane.b32.xlu0 %v727, 48
  %v883 = vpop.permute.xlu0 %882
  %884 = vrot.lane.b32.xlu0 %v877, 48
  %v885 = vpop.permute.xlu0 %884
  %v890 = vsel %vm155, %v748, %v156
  %v891 = vsel %vm155, %v752, %v156
  %892 = vrot.lane.b32.xlu0 %v749, 52
  %v893 = vpop.permute.xlu0 %892
  %894 = vrot.lane.b32.xlu0 %v890, 52
  %v895 = vpop.permute.xlu0 %894
  %896 = vrot.lane.b32.xlu0 %v753, 52
  %v897 = vpop.permute.xlu0 %896
  %898 = vrot.lane.b32.xlu0 %v891, 52
  %v899 = vpop.permute.xlu0 %898
  %v904 = vsel %vm183, %v774, %v184
  %v905 = vsel %vm183, %v778, %v184
  %906 = vrot.lane.b32.xlu0 %v775, 56
  %v907 = vpop.permute.xlu0 %906
  %908 = vrot.lane.b32.xlu0 %v904, 56
  %v909 = vpop.permute.xlu0 %908
  %910 = vrot.lane.b32.xlu0 %v779, 56
  %v911 = vpop.permute.xlu0 %910
  %912 = vrot.lane.b32.xlu0 %v905, 56
  %v913 = vpop.permute.xlu0 %912
  %v918 = vsel %vm353, 0.0, %v651
  %v919 = vsel %vm353, %v626, %v653
  %v920 = vsel %vm353, %v627, %v655
  %v921 = vsel %vm353, 0.0, %v657
  %v922 = vsel %vm353, %v628, %v659
  %v923 = vsel %vm353, %v629, %v661
  %v924 = vsel %vm360, %v918, %v677
  %v925 = vsel %vm360, %v919, %v679
  %v926 = vsel %vm360, %v920, %v681
  %v927 = vsel %vm360, %v921, %v683
  %v928 = vsel %vm360, %v922, %v685
  %v929 = vsel %vm360, %v923, %v687
  %v930 = vsel %vm367, %v924, %v703
  %v931 = vsel %vm367, %v925, %v705
  %v932 = vsel %vm367, %v926, %v707
  %v933 = vsel %vm367, %v927, %v709
  %v934 = vsel %vm367, %v928, %v711
  %v935 = vsel %vm367, %v929, %v713
  %v936 = vsel %vm374, %v930, %v729
  %v937 = vsel %vm374, %v931, %v731
  %v938 = vsel %vm374, %v932, %v733
  %v939 = vsel %vm374, %v933, %v735
  %v940 = vsel %vm374, %v934, %v737
  %v941 = vsel %vm374, %v935, %v739
  %v942 = vsel %vm381, %v936, %v755
  %v943 = vsel %vm381, %v937, %v757
  %v944 = vsel %vm381, %v938, %v759
  %v945 = vsel %vm381, %v939, %v761
  %v946 = vsel %vm381, %v940, %v763
  %v947 = vsel %vm381, %v941, %v765
  %v948 = vsel %vm388, %v942, %v781
  %v949 = vsel %vm388, %v943, %v783
  %v950 = vsel %vm388, %v944, %v785
  %v951 = vsel %vm388, %v945, %v787
  %v952 = vsel %vm388, %v946, %v789
  %v953 = vsel %vm388, %v947, %v791
  %v954 = vsel %vm395, %v948, %v805
  %v955 = vsel %vm395, %v949, %v807
  %v956 = vsel %vm395, %v950, %v809
  %v957 = vsel %vm395, %v951, %v811
  %v958 = vsel %vm395, %v952, %v813
  %v959 = vsel %vm395, %v953, %v815
  %v960 = vsel %vm402, %v954, %v823
  %v961 = vsel %vm402, %v955, %v825
  %v962 = vsel %vm402, %v956, %v241
  %v963 = vsel %vm402, %v957, %v827
  %v964 = vsel %vm402, %v958, %v829
  %v965 = vsel %vm402, %v959, %v241
  %v966 = vsel %vm409, %v960, %v837
  %v967 = vsel %vm409, %v961, %v839
  %v968 = vsel %vm409, %v962, %v258
  %v969 = vsel %vm409, %v963, %v841
  %v970 = vsel %vm409, %v964, %v843
  %v971 = vsel %vm409, %v965, %v258
  %v972 = vsel %vm416, %v966, %v851
  %v973 = vsel %vm416, %v967, %v853
  %v974 = vsel %vm416, %v968, %v275
  %v975 = vsel %vm416, %v969, %v855
  %v976 = vsel %vm416, %v970, %v857
  %v977 = vsel %vm416, %v971, %v275
  %v978 = vsel %vm423, %v972, %v865
  %v979 = vsel %vm423, %v973, %v867
  %v980 = vsel %vm423, %v974, %v292
  %v981 = vsel %vm423, %v975, %v869
  %v982 = vsel %vm423, %v976, %v871
  %v983 = vsel %vm423, %v977, %v292
  %v984 = vsel %vm430, %v978, %v879
  %v985 = vsel %vm430, %v979, %v881
  %v986 = vsel %vm430, %v980, %v309
  %v987 = vsel %vm430, %v981, %v883
  %v988 = vsel %vm430, %v982, %v885
  %v989 = vsel %vm430, %v983, %v309
  %v990 = vsel %vm437, %v984, %v893
  %v991 = vsel %vm437, %v985, %v895
  %v992 = vsel %vm437, %v986, %v326
  %v993 = vsel %vm437, %v987, %v897
  %v994 = vsel %vm437, %v988, %v899
  %v995 = vsel %vm437, %v989, %v326
  %v996 = vsel %vm444, %v990, %v907
  %v997 = vsel %vm444, %v991, %v909
  %v998 = vsel %vm444, %v992, %v343
  %v999 = vsel %vm444, %v993, %v911
  %v1000 = vsel %vm444, %v994, %v913
  %v1001 = vsel %vm444, %v995, %v343
  %v1008 = vrot.slane %v996, 1
  %v1009 = vrot.slane %v997, 1
  %v1010 = vsel %vm43, %v1008, %v1009
  %v1011 = vrot.slane %v998, 1
  %v1012 = vsel %vm43, %v1009, %v1011
  %v1013 = vrot.slane %v999, 1
  %v1014 = vrot.slane %v1000, 1
  %v1015 = vsel %vm43, %v1013, %v1014
  %v1016 = vrot.slane %v1001, 1
  %v1017 = vsel %vm43, %v1014, %v1016
  %v1018 = vsel %vm467, %v1010, 0
  %v1020 = vsel %vm467, %v1012, 0
  %v1022 = vsel %vm467, %v1015, 0
  %v1024 = vsel %vm467, %v1017, 0
  %v1027 = vsel %vm127, %v637, 0
  %1029 = vmatprep.subr.mxu0 0.0
  %1030 = vmatpush1.msra.mxu0 %v630
  %1031 = vmatprep.subr.mxu0 0.0
  %1032 = vmatpush1.msra.mxu0 %v631
  %1033 = vmatprep.subr.mxu0 0.0
  %1034 = vmatpush1.msra.mxu0 %v632
  %1035 = vmatprep.subr.mxu0 0.0
  %1036 = vmatpush1.msra.mxu0 %v633
  %1037 = vmatprep.subr.mxu0 0.0
  %1038 = vmatpush1.msra.mxu0 %v634
  %1039 = vmatprep.subr.mxu0 0.0
  %1040 = vmatpush1.msra.mxu0 %v635
  %1041 = vmatprep.subr.mxu0 0.0
  %1042 = vmatpush1.msra.mxu0 %v636
  %1043 = vmatprep.subr.mxu0 0.0
  %1044 = vmatpush1.msra.mxu0 %v1027
  %1045 = vmatprep.subr.mxu0 0.0
  %1046 = vmatpush1.msra.mxu0 0.0
  %1047 = vmatprep.subr.mxu0 0.0
  %1048 = vmatpush1.msra.mxu0 0.0
  %1049 = vmatprep.subr.mxu0 0.0
  %1050 = vmatpush1.msra.mxu0 0.0
  %1051 = vmatprep.subr.mxu0 0.0
  %1052 = vmatpush1.msra.mxu0 0.0
  %1053 = vmatprep.subr.mxu0 0.0
  %1054 = vmatpush1.msra.mxu0 0.0
  %1055 = vmatprep.subr.mxu0 0.0
  %1056 = vmatpush1.msra.mxu0 0.0
  %1057 = vmatprep.subr.mxu0 0.0
  %1058 = vmatpush1.msra.mxu0 0.0
  %1059 = vmatprep.subr.mxu0 0.0
  %1060 = vmatpush1.msra.mxu0 0.0
  %1061 = vmatprep.subr.mxu0 0.0
  %1062 = vmatpush1.msra.mxu0 0.0
  %1063 = vmatprep.subr.mxu0 0.0
  %1064 = vmatpush1.msra.mxu0 0.0
  %1065 = vmatprep.subr.mxu0 0.0
  %1066 = vmatpush1.msra.mxu0 0.0
  %1067 = vmatprep.subr.mxu0 0.0
  %1068 = vmatpush1.msra.mxu0 0.0
  %1069 = vmatprep.subr.mxu0 0.0
  %1070 = vmatpush1.msra.mxu0 0.0
  %1071 = vmatprep.subr.mxu0 0.0
  %1072 = vmatpush1.msra.mxu0 0.0
  %1073 = vmatprep.subr.mxu0 0.0
  %1074 = vmatpush1.msra.mxu0 0.0
  %1075 = vmatprep.subr.mxu0 0.0
  %1076 = vmatpush1.msra.mxu0 0.0
  %1077 = vmatprep.subr.mxu0 0.0
  %1078 = vmatpush1.msra.mxu0 0.0
  %1079 = vmatprep.subr.mxu0 0.0
  %1080 = vmatpush1.msra.mxu0 0.0
  %1081 = vmatprep.subr.mxu0 0.0
  %1082 = vmatpush1.msra.mxu0 0.0
  %1083 = vmatprep.subr.mxu0 0.0
  %1084 = vmatpush1.msra.mxu0 0.0
  %1085 = vmatprep.subr.mxu0 0.0
  %1086 = vmatpush1.msra.mxu0 0.0
  %1087 = vmatprep.subr.mxu0 0.0
  %1088 = vmatpush1.msra.mxu0 0.0
  %1089 = vmatprep.subr.mxu0 0.0
  %1090 = vmatpush1.msra.mxu0 0.0
  %1091 = vmatprep.subr.mxu0 0.0
  %1092 = vmatpush1.msra.mxu0 0.0
  %1093 = vmatprep.mubr.f32.mxu0 0.0
  %1094 = vmatmul.mubr.f32.gmra.mrb[0].mxu0 %v1018
  %v1095 = vpop.f32.mrb[0].mxu0
  %v1096 = vadd.f32 0.0, %v1095
  %v1097 = vpop.f32.mrb[0].mxu0
  %1098 = vmatprep.mubr.f32.mxu0 0.0
  %1099 = vmatmul.mubr.f32.gmra.mrb[0].mxu0 %v1020
  %v1100 = vpop.f32.mrb[0].mxu0
  %v1101 = vadd.f32 0.0, %v1100
  %v1102 = vpop.f32.mrb[0].mxu0
  %1103 = vmatprep.mubr.f32.mxu0 0.0
  %1104 = vmatmul.mubr.f32.gmra.mrb[0].mxu0 %v1022
  %v1105 = vpop.f32.mrb[0].mxu0
  %v1106 = vadd.f32 0.0, %v1105
  %v1107 = vpop.f32.mrb[0].mxu0
  %1108 = vmatprep.mubr.f32.mxu0 0.0
  %1109 = vmatmul.mubr.f32.gmra.mrb[0].mxu0 %v1024
  %v1110 = vpop.f32.mrb[0].mxu0
  %v1111 = vadd.f32 0.0, %v1110
  %v1112 = vpop.f32.mrb[0].mxu0
  %1113 = vdwg.mxu0
  %v1114 = vld [vmem:[%s5] sm:$0x1]
  %v1115 = vld [vmem:[%s6] sm:$0x1]
  %v1116 = vsel %vm353, %v1096, 0.0
  %v1117 = vsel %vm353, %v1101, 0.0
  %v1118 = vadd.f32 %v1116, %v1117
  %v1119 = vsel %vm353, %v1106, 0.0
  %v1120 = vadd.f32 %v1118, %v1119
  %v1121 = vsel %vm353, %v1111, 0.0
  %v1122 = vadd.f32 %v1120, %v1121
  %v1123 = vrot.slane %v1122, 4
  %v1124 = vadd.f32 %v1122, %v1123
  %v1125 = vrot.slane %v1124, 2
  %v1126 = vadd.f32 %v1124, %v1125
  %v1127 = vrot.slane %v1126, 1
  %v1128 = vadd.f32 %v1126, %v1127
  %v1129 = vmul.f32 %v1096, %v1096
  %v1130 = vmul.f32 %v1101, %v1101
  %v1131 = vmul.f32 %v1106, %v1106
  %v1132 = vmul.f32 %v1111, %v1111
  %v1133 = vsel %vm353, %v1129, 0.0
  %v1134 = vsel %vm353, %v1130, 0.0
  %v1135 = vadd.f32 %v1133, %v1134
  %v1136 = vsel %vm353, %v1131, 0.0
  %v1137 = vadd.f32 %v1135, %v1136
  %v1138 = vsel %vm353, %v1132, 0.0
  %v1139 = vadd.f32 %v1137, %v1138
  %v1140 = vrot.slane %v1139, 4
  %v1141 = vadd.f32 %v1139, %v1140
  %v1142 = vrot.slane %v1141, 2
  %v1143 = vadd.f32 %v1141, %v1142
  %v1144 = vrot.slane %v1143, 1
  %v1145 = vadd.f32 %v1143, %v1144
  %v1146 = vmul.f32 %v1128, 0.03125
  %v1147 = vmul.f32 %v1145, 0.03125
  %v1148 = vmul.f32 %v1146, %v1146
  %v1149 = vsub.f32 %v1147, %v1148
  %v1150 = vmax.f32 %v1149, 0.0
  %v1151 = vadd.f32 %v1150, 1e-05
  %v1152 = vrsqrt.pop %v1151
  %v1153 = vmul.f32 %v1114, %v1152
  %v1154 = vmul.f32 %v1146, %v1153
  %v1155 = vsub.f32 %v1115, %v1154
  %v1157 = vlaneseq
  %v1158 = vshrl.u32 %v1157, 7
  %v1159 = vsub.s32 0, %v1158
  %v1160 = vrot.slane %v1153, %v1159
  %v1162 = vmul.f32 %v1096, %v1160
  %v1163 = vmul.f32 %v1101, %v1160
  %v1164 = vmul.f32 %v1106, %v1160
  %v1165 = vmul.f32 %v1111, %v1160
  %v1167 = vlaneseq
  %v1168 = vshrl.u32 %v1167, 7
  %v1169 = vsub.s32 0, %v1168
  %v1170 = vrot.slane %v1155, %v1169
  %v1172 = vadd.f32 %v1162, %v1170
  %v1173 = vadd.f32 %v1163, %v1170
  %v1174 = vadd.f32 %v1164, %v1170
  %v1175 = vadd.f32 %v1165, %v1170
  %v1176 = vadd.f32 %v1172, %v26
  %v1177 = vadd.f32 %v1173, %v27
  %v1178 = vadd.f32 %v1174, %v28
  %v1179 = vadd.f32 %v1175, %v29
  %v1180 = vmax.f32 %v1176, 0.0
  %v1181 = vmax.f32 %v1177, 0.0
  %v1182 = vmax.f32 %v1178, 0.0
  %v1183 = vmax.f32 %v1179, 0.0
  %1184 = vst.msk [vmem:[%s7] sm:$0xff] %vm353, %v1180
  %1185 = vst.msk [vmem:[%s7 + $0x8] sm:$0xff] %vm353, %v1181
  %1186 = vst.msk [vmem:[%s7 + $0x10] sm:$0xff] %vm353, %v1182
  %1187 = vst.msk [vmem:[%s7 + $0x18] sm:$0xff] %vm353, %v1183
  // Predicated region
  $region30: #{tpu_custom_call.1} parent=0 // pred_check
    _
  $region31: #{tpu_custom_call.1} parent=0 // pred_check_branch
    %1189 = sbr.rel (0) target = $region33
  $region32: #{tpu_custom_call.1} parent=0 // pred_region
    _
  $region33: #{tpu_custom_call.1} parent=0 // pred_fallthru
    _
  // Predicated region
  $region34: #{tpu_custom_call.1} parent=0 // pred_check
    _
  $region35: #{tpu_custom_call.1} parent=0 // pred_check_branch
    %1191 = sbr.rel (0) target = $region37
  $region36: #{tpu_custom_call.1} parent=0 // pred_region
    _
  $region37: #{tpu_custom_call.1} parent=0 // pred_fallthru
    _

</llo_original>
